<compile_context>
chip_gen: v6e
topology: v6e:2x2x1
jax: 0.10.0
libtpu: 0.0.40
codegen_flags: <defaults>
</compile_context>

<pallas_src>
import functools

import jax
import jax.numpy as jnp
from jax.experimental import pallas as pl
from jax.experimental.pallas import tpu as pltpu


def _project_logits_kernel(x_ref, emb_ref, w_ref, attx_ref, attem_ref, a_ref):
    """Per node tile: xp = x @ W ; a = xp @ attx_pack + emb @ attem_pack  -> (TN, 2H).

    Column h of `a` is the node's source-side logit contribution (a_i) for head h,
    column H + h its destination-side contribution (a_j)."""
    f32 = jnp.float32
    xp = jnp.dot(x_ref[...], w_ref[...], preferred_element_type=f32)          # (TN, H*O) f32
    a_ref[...] = (jnp.dot(xp, attx_ref[...], preferred_element_type=f32)
                  + jnp.dot(emb_ref[...], attem_ref[...], preferred_element_type=f32))


def _attend_scale_kernel(x_ref, w_ref, logits_ref, out_ref, *, heads, negative_slope):
    """Per destination-node tile: recompute xp, leaky-relu + softmax-over-heads on the
    packed (TN, H*D) logit plane, mean over the D incoming edges, scale xp, store."""
    f32 = jnp.float32
    tn = x_ref.shape[0]
    hd = logits_ref.shape[1]
    deg = hd // heads
    ho = w_ref.shape[1]
    out_c = ho // heads

    # xp recompute on the otherwise-idle MXU (saves an HBM round trip of xp).
    xp = jnp.dot(x_ref[...], w_ref[...], preferred_element_type=f32)          # (TN, H*O)

    # leaky-relu once on the full packed plane (lanes = H*D, h-major).
    a = logits_ref[...]                                                       # (TN, H*D) f32
    a = jnp.where(a >= 0, a, negative_slope * a)

    # per-head (TN, D) planes (static lane slices of the packed plane)
    planes = [a[:, h * deg:(h + 1) * deg] for h in range(heads)]

    # softmax over heads (per node & incoming edge)
    m = planes[0]
    for p in planes[1:]:
        m = jnp.maximum(m, p)
    exps = [jnp.exp(p - m) for p in planes]
    den = exps[0]
    for e in exps[1:]:
        den = den + e
    inv = pl.reciprocal(den)                                                  # exact; cheap for H terms
    # dropout p=0 -> identity

    # mean over the D incoming edges per head, broadcast over that head's O channels
    inv_deg = 1.0 / deg
    cols = []
    for e in exps:
        mean_h = jnp.sum(e * inv, axis=-1, keepdims=True) * inv_deg           # (TN, 1)
        cols.append(jnp.broadcast_to(mean_h, (tn, out_c)))
    scale = jnp.concatenate(cols, axis=-1)                                    # (TN, H*O)

    out_ref[...] = (xp * scale).astype(out_ref.dtype)                         # direct (TN, H*O) store


def graph_layer_forward(x, embedding, src_idx, params, negative_slope=0.2,
                        node_block=512, matmul_dtype=jnp.float32):
    """x: (N, Cin); embedding: (N, O); src_idx: (N, D) int32 (valid indices in [0, N)).
    params = (w_t (Cin, H*O) head-major columns, att_i (H, O), att_j (H, O),
              att_em_i (H, O), att_em_j (H, O)).
    Returns (N, H, O), i.e. the torch module's x.mean(dim=1)."""
    w_t, att_i, att_j, att_em_i, att_em_j = params
    f32 = jnp.float32
    n_nodes, c_in = x.shape
    heads, out_c = att_i.shape
    deg = src_idx.shape[1]
    ho = heads * out_c
    assert w_t.shape == (c_in, ho), "lin weight must be (Cin, heads*out_c), head-major"
    assert embedding.shape == (n_nodes, out_c)

    # node tile: multiple of 8 dividing N, otherwise the whole array
    tn = node_block if (n_nodes % node_block == 0 and node_block % 8 == 0
                        and node_block <= n_nodes) else n_nodes
    grid = (n_nodes // tn,)

    # ---- pack the 4 attention vectors into two small resident matrices ----
    # attx_pack (H*O, 2H): block-diagonal per-head broadcast of att_i / att_j so that
    #   xp @ attx_pack[:, h]   = <xp[:, head h cols], att_i[h]>   (and att_j in cols H..2H-1)
    head_rep = jnp.kron(jnp.eye(heads, dtype=f32), jnp.ones((1, out_c), f32))   # (H, H*O)
    ai_bd = head_rep.T * att_i.reshape(ho, 1).astype(f32)                       # (H*O, H)
    aj_bd = head_rep.T * att_j.reshape(ho, 1).astype(f32)
    attx_pack = jnp.concatenate([ai_bd, aj_bd], axis=1)                         # (H*O, 2H)
    attem_pack = jnp.concatenate([att_em_i.T.astype(f32),
                                  att_em_j.T.astype(f32)], axis=1)              # (O, 2H)

    xm = x.astype(matmul_dtype)          # MXU operands may be bf16 (f32 accumulate)
    wm = w_t.astype(matmul_dtype)
    emb_f = embedding.astype(f32)

    cparams = pltpu.CompilerParams(
        dimension_semantics=("parallel",),            # megacore-friendly
        vmem_limit_bytes=48 * 1024 * 1024)            # fits v7x 64 MiB; fine on v5e/v6e

    # ---- kernel 1: projection + per-node attention-logit table (N, 2H) only ----
    a_tab = pl.pallas_call(
        _project_logits_kernel,
        grid=grid,
        in_specs=[pl.BlockSpec((tn, c_in), lambda i: (i, 0)),
                  pl.BlockSpec((tn, out_c), lambda i: (i, 0)),
                  pl.BlockSpec((c_in, ho), lambda i: (0, 0)),          # resident
                  pl.BlockSpec((ho, 2 * heads), lambda i: (0, 0)),     # resident
                  pl.BlockSpec((out_c, 2 * heads), lambda i: (0, 0))], # resident
        out_specs=pl.BlockSpec((tn, 2 * heads), lambda i: (i, 0)),
        out_shape=jax.ShapeDtypeStruct((n_nodes, 2 * heads), f32),
        compiler_params=cparams,
    )(xm, emb_f, wm, attx_pack, attem_pack)

    # ---- XLA-side edge gather (O(N*D*H) bytes, no O(N^2) work anywhere) ----
    # logits[n, d, h] = a_i[src[n, d], h] + a_j[n, h]; packed h-major along lanes.
    a_i = a_tab[:, :heads]
    a_j = a_tab[:, heads:]
    logits = a_i[src_idx] + a_j[:, None, :]                                     # (N, D, H)
    logits_pack = jnp.transpose(logits, (0, 2, 1)).reshape(n_nodes, heads * deg)  # (N, H*D)

    # ---- kernel 2: softmax over heads, mean over edges, scale xp, direct store ----
    out = pl.pallas_call(
        functools.partial(_attend_scale_kernel, heads=heads,
                          negative_slope=float(negative_slope)),
        grid=grid,
        in_specs=[pl.BlockSpec((tn, c_in), lambda i: (i, 0)),
                  pl.BlockSpec((c_in, ho), lambda i: (0, 0)),          # resident W (xp recompute)
                  pl.BlockSpec((tn, heads * deg), lambda i: (i, 0))],
        out_specs=pl.BlockSpec((tn, ho), lambda i: (i, 0)),
        out_shape=jax.ShapeDtypeStruct((n_nodes, ho), f32),
        compiler_params=cparams,
    )(xm, wm, logits_pack)

    return out.reshape(n_nodes, heads, out_c)


def graph_layer_reference(x, embedding, src_idx, params, negative_slope=0.2):
    """Pure-JAX replica of the torch forward (for verification)."""
    w_t, att_i, att_j, att_em_i, att_em_j = params
    n, _ = x.shape
    heads, out_c = att_i.shape
    deg = src_idx.shape[1]
    xp = (x @ w_t).reshape(n, heads, out_c)
    x_i = xp[src_idx]                                                   # (N, D, H, O) src
    x_j = jnp.broadcast_to(xp[:, None], (n, deg, heads, out_c))         # dst
    emb_i = jnp.broadcast_to(embedding[src_idx][:, :, None, :], (n, deg, heads, out_c))
    emb_j = jnp.broadcast_to(embedding[:, None, None, :], (n, deg, heads, out_c))
    key_i = jnp.concatenate([x_i, emb_i], axis=-1)
    key_j = jnp.concatenate([x_j, emb_j], axis=-1)
    cat_att_i = jnp.concatenate([att_i, att_em_i], axis=-1)             # (H, 2O)
    cat_att_j = jnp.concatenate([att_j, att_em_j], axis=-1)
    alpha = (key_i * cat_att_i).sum(-1) + (key_j * cat_att_j).sum(-1)   # (N, D, H)
    alpha = jnp.where(alpha >= 0, alpha, negative_slope * alpha)
    alpha = jax.nn.softmax(alpha, axis=-1)                              # over heads
    return (x_j * alpha[..., None]).mean(axis=1)                        # (N, H, O)


if __name__ == "__main__":
    N, C_IN, OUT_C, HEADS, DEG = 64, 8, 16, 2, 16

    key = jax.random.PRNGKey(0)
    ks = jax.random.split(key, 8)
    x = jax.random.normal(ks[0], (N, C_IN), jnp.float32)
    embedding = jax.random.normal(ks[1], (N, OUT_C), jnp.float32)

    # Parameter init (shapes per __init__).  reset_parameters() zeros att_em_*;
    # small random values used instead so the embedding path is exercised.
    w_t = jax.random.normal(ks[2], (C_IN, HEADS * OUT_C), jnp.float32) * 0.3
    att_i = jax.random.normal(ks[3], (HEADS, OUT_C), jnp.float32) * 0.3
    att_j = jax.random.normal(ks[4], (HEADS, OUT_C), jnp.float32) * 0.3
    att_em_i = jax.random.normal(ks[5], (HEADS, OUT_C), jnp.float32) * 0.1
    att_em_j = jax.random.normal(ks[6], (HEADS, OUT_C), jnp.float32) * 0.1
    params = (w_t, att_i, att_j, att_em_i, att_em_j)

    # Constant in-degree graph: self-loop + random neighbours per destination node.
    rand_src = jax.random.randint(ks[7], (N, DEG - 1), 0, N, dtype=jnp.int32)
    self_loop = jnp.arange(N, dtype=jnp.int32)[:, None]
    src_idx = jnp.concatenate([self_loop, rand_src], axis=1)             # (N, DEG)

    ref = graph_layer_reference(x, embedding, src_idx, params)

    # f32 path (exact reciprocal in the softmax -> tight tolerance)
    out = graph_layer_forward(x, embedding, src_idx, params, node_block=32)
    out = jax.block_until_ready(out)
    assert out.shape == (N, HEADS, OUT_C), out.shape
    max_err = float(jnp.max(jnp.abs(out - ref)))
    assert jnp.allclose(out, ref, atol=1e-4, rtol=1e-4), max_err

    # bf16 MXU-operand path (f32 accumulation; elementwise math stays f32)
    out_bf16 = graph_layer_forward(x, embedding, src_idx, params, node_block=32,
                                   matmul_dtype=jnp.bfloat16)
    out_bf16 = jax.block_until_ready(out_bf16)
    assert jnp.allclose(out_bf16, ref, atol=5e-2, rtol=5e-2), \
        float(jnp.max(jnp.abs(out_bf16 - ref)))

    print("KERNEL_OK")
</pallas_src>

<mosaic_0001>
module attributes {stable_mosaic.version = 11 : i64} {
  func.func @_project_logits_kernel(%arg0: i32, %arg1: memref<32x8xf32, #tpu.memory_space<vmem>>, %arg2: memref<32x16xf32, #tpu.memory_space<vmem>>, %arg3: memref<8x32xf32, #tpu.memory_space<vmem>>, %arg4: memref<32x4xf32, #tpu.memory_space<vmem>>, %arg5: memref<16x4xf32, #tpu.memory_space<vmem>>, %arg6: memref<32x4xf32, #tpu.memory_space<vmem>>) attributes {dimension_semantics = [#tpu.dimension_semantics<parallel>], iteration_bounds = array<i64: 2>, scalar_prefetch = 0 : i64, scratch_operands = 0 : i64, tpu.core_type = #tpu.core_type<tc>, window_params = [{transform_indices = @transform_0, window_bounds = array<i64: 32, 8>}, {transform_indices = @transform_1, window_bounds = array<i64: 32, 16>}, {pipeline_mode = #tpu.pipeline_mode<synchronous>, transform_indices = @transform_2, window_bounds = array<i64: 8, 32>}, {pipeline_mode = #tpu.pipeline_mode<synchronous>, transform_indices = @transform_3, window_bounds = array<i64: 32, 4>}, {pipeline_mode = #tpu.pipeline_mode<synchronous>, transform_indices = @transform_4, window_bounds = array<i64: 16, 4>}, {transform_indices = @transform_5, window_bounds = array<i64: 32, 4>}]} {
    %c0 = arith.constant 0 : index
    %c0_0 = arith.constant 0 : index
    %0 = vector.load %arg1[%c0, %c0_0] : memref<32x8xf32, #tpu.memory_space<vmem>>, vector<32x8xf32>
    %c0_1 = arith.constant 0 : index
    %c0_2 = arith.constant 0 : index
    %1 = vector.load %arg3[%c0_1, %c0_2] : memref<8x32xf32, #tpu.memory_space<vmem>>, vector<8x32xf32>
    %cst = arith.constant dense<0.000000e+00> : vector<32x32xf32>
    %2 = tpu.matmul %0, %1, %cst {dimension_numbers = #tpu.dot_dimension_numbers<[1], [0], [0], [1], [0, 0, 1, 1], [], []>} : vector<32x8xf32>, vector<8x32xf32>, vector<32x32xf32> -> vector<32x32xf32>
    %c0_3 = arith.constant 0 : index
    %c0_4 = arith.constant 0 : index
    %3 = vector.load %arg4[%c0_3, %c0_4] : memref<32x4xf32, #tpu.memory_space<vmem>>, vector<32x4xf32>
    %cst_5 = arith.constant dense<0.000000e+00> : vector<32x4xf32>
    %4 = tpu.matmul %2, %3, %cst_5 {dimension_numbers = #tpu.dot_dimension_numbers<[1], [0], [0], [1], [0, 0, 1, 1], [], []>} : vector<32x32xf32>, vector<32x4xf32>, vector<32x4xf32> -> vector<32x4xf32>
    %c0_6 = arith.constant 0 : index
    %c0_7 = arith.constant 0 : index
    %5 = vector.load %arg2[%c0_6, %c0_7] : memref<32x16xf32, #tpu.memory_space<vmem>>, vector<32x16xf32>
    %c0_8 = arith.constant 0 : index
    %c0_9 = arith.constant 0 : index
    %6 = vector.load %arg5[%c0_8, %c0_9] : memref<16x4xf32, #tpu.memory_space<vmem>>, vector<16x4xf32>
    %cst_10 = arith.constant dense<0.000000e+00> : vector<32x4xf32>
    %7 = tpu.matmul %5, %6, %cst_10 {dimension_numbers = #tpu.dot_dimension_numbers<[1], [0], [0], [1], [0, 0, 1, 1], [], []>} : vector<32x16xf32>, vector<16x4xf32>, vector<32x4xf32> -> vector<32x4xf32>
    %8 = arith.addf %4, %7 : vector<32x4xf32>
    %c0_11 = arith.constant 0 : index
    %c0_12 = arith.constant 0 : index
    %9 = vector.load %arg6[%c0_11, %c0_12] : memref<32x4xf32, #tpu.memory_space<vmem>>, vector<32x4xf32>
    tpu.vector_store %arg6[%c0_11, %c0_12], %8 {strides = array<i32>} : memref<32x4xf32, #tpu.memory_space<vmem>>, vector<32x4xf32>,
    return
  }
  func.func @transform_0(%arg0: i32) -> (i32, i32) {
    %c0_i32 = arith.constant 0 : i32
    %c0_i32_0 = arith.constant 0 : i32
    return %arg0, %c0_i32 : i32, i32
  }
  func.func @transform_1(%arg0: i32) -> (i32, i32) {
    %c0_i32 = arith.constant 0 : i32
    %c0_i32_0 = arith.constant 0 : i32
    return %arg0, %c0_i32 : i32, i32
  }
  func.func @transform_2(%arg0: i32) -> (i32, i32) {
    %c0_i32 = arith.constant 0 : i32
    %c0_i32_0 = arith.constant 0 : i32
    %c0_i32_1 = arith.constant 0 : i32
    return %c0_i32, %c0_i32_0 : i32, i32
  }
  func.func @transform_3(%arg0: i32) -> (i32, i32) {
    %c0_i32 = arith.constant 0 : i32
    %c0_i32_0 = arith.constant 0 : i32
    %c0_i32_1 = arith.constant 0 : i32
    return %c0_i32, %c0_i32_0 : i32, i32
  }
  func.func @transform_4(%arg0: i32) -> (i32, i32) {
    %c0_i32 = arith.constant 0 : i32
    %c0_i32_0 = arith.constant 0 : i32
    %c0_i32_1 = arith.constant 0 : i32
    return %c0_i32, %c0_i32_0 : i32, i32
  }
  func.func @transform_5(%arg0: i32) -> (i32, i32) {
    %c0_i32 = arith.constant 0 : i32
    %c0_i32_0 = arith.constant 0 : i32
    return %arg0, %c0_i32 : i32, i32
  }
}

</mosaic_0001>

<llo_original>
// kernel: tpu_custom_call.1
$region0: #{tpu_custom_call.1}
  #allocation0 [shape = 'u32[]', space=smem, size = 0x4, offset = 0x4, fixed_abs, tag = 'smem constant byte address 0x4 - core index']
  #allocation1 [shape = 'u32[144,128]{1,0:T(1,128)}', space=vmem, size = 0x12000, scoped, tag = 'internal scratch']
  %s0 = inlined_call_operand.vmem [shape: f32[64,8], index: 0, kind: input, shape index: {}]
  %s1 = inlined_call_operand.vmem [shape: f32[64,16], index: 1, kind: input, shape index: {}]
  %s2 = inlined_call_operand.vmem [shape: f32[8,32], index: 2, kind: input, shape index: {}]
  %s3 = inlined_call_operand.vmem [shape: f32[32,4], index: 3, kind: input, shape index: {}]
  %s4 = inlined_call_operand.vmem [shape: f32[16,4], index: 4, kind: input, shape index: {}]
  %s5 = inlined_call_operand.vmem [shape: f32[64,4], index: 5, kind: output, shape index: {}]
  %s6 = sld [smem:[#allocation0]]
  $region53: #{tpu_custom_call.1} parent=0
    _
  %s8 = ssub.s32 1, %s6
  %s9 = scalar_select 0, %s8, %s6
  loop: start=0, step=1, limit=4
  $region2: #{tpu_custom_call.1} parent=0 // loop_pre_header
    _
  $region3: #{tpu_custom_call.1} parent=0 // loop_header
    %s11 = sphi 0, %s15
    %p12 = scmp.ge.s32.totalorder %s11, 4
    %s21 = sphi 0, %s23
    %s24 = sphi 0, %s21
    %s25 = sphi 0, %s24
    %s41 = sphi 0, %s25
    %s47 = sphi 0, %s49
    %s50 = sphi 0, %s47
    %s51 = sphi 0, %s50
    %s67 = sphi 0, %s51
    %s71 = sphi 0, %s71
    %s73 = sphi 0, %s71
    %s74 = sphi 0, %s73
    %s88 = sphi 0, %s74
    %s92 = sphi 0, %s92
    %s94 = sphi 0, %s92
    %s95 = sphi 0, %s94
    %s109 = sphi 0, %s95
    %s113 = sphi 0, %s113
    %s115 = sphi 0, %s113
    %s116 = sphi 0, %s115
    %s130 = sphi 0, %s116
    %s136 = sphi 0, %s138
    %s139 = sphi 0, %s136
    %s140 = sphi 0, %s139
    %s156 = sphi 0, %s140
  $region4: #{tpu_custom_call.1} parent=0 // loop_header_branch
    %14 = sbr.rel (%p12) target = $region8
  $region5: #{tpu_custom_call.1} parent=0 // loop_body
    %s16 = ssub.s32 %s11, 1
    %s17 = ssub.s32 %s11, 2
    %s18 = sadd.s32 %s11, 1
    %s19 = ssub.s32 %s11, %s18
    %p20 = scmp.eq.s32.totalorder %s19, 0
    %s22 = sadd.s32 %s21, 1
    %s23 = scalar_select %p20, %s21, %s22
    %p26 = pneg %p20
    %p27 = scmp.eq.s32.totalorder %s11, 1
    %p28 = por %p26, %p27
    %p29 = scmp.ne.s32.totalorder %s21, %s24
    %p30 = scmp.eq.s32.totalorder %s11, 0
    %p31 = por %p29, %p30
    %p32 = scmp.ne.s32.totalorder %s21, %s24
    %p33 = scmp.eq.s32.totalorder %s16, 1
    %p34 = por %p32, %p33
    %p35 = scmp.ne.s32.totalorder %s24, %s25
    %p36 = scmp.eq.s32.totalorder %s16, 0
    %p37 = por %p35, %p36
    %p38 = scmp.ne.s32.totalorder %s24, %s25
    %p39 = scmp.eq.s32.totalorder %s17, 1
    %p40 = por %p38, %p39
    %p42 = scmp.ne.s32.totalorder %s25, %s41
    %p43 = scmp.eq.s32.totalorder %s17, 0
    %p44 = por %p42, %p43
    %s45 = ssub.s32 %s11, %s18
    %p46 = scmp.eq.s32.totalorder %s45, 0
    %s48 = sadd.s32 %s47, 1
    %s49 = scalar_select %p46, %s47, %s48
    %p52 = pneg %p46
    %p53 = scmp.eq.s32.totalorder %s11, 1
    %p54 = por %p52, %p53
    %p55 = scmp.ne.s32.totalorder %s47, %s50
    %p56 = scmp.eq.s32.totalorder %s11, 0
    %p57 = por %p55, %p56
    %p58 = scmp.ne.s32.totalorder %s47, %s50
    %p59 = scmp.eq.s32.totalorder %s16, 1
    %p60 = por %p58, %p59
    %p61 = scmp.ne.s32.totalorder %s50, %s51
    %p62 = scmp.eq.s32.totalorder %s16, 0
    %p63 = por %p61, %p62
    %p64 = scmp.ne.s32.totalorder %s50, %s51
    %p65 = scmp.eq.s32.totalorder %s17, 1
    %p66 = por %p64, %p65
    %p68 = scmp.ne.s32.totalorder %s51, %s67
    %p69 = scmp.eq.s32.totalorder %s17, 0
    %p70 = por %p68, %p69
    %s72 = sadd.s32 %s71, 1
    %p75 = scmp.eq.s32.totalorder %s11, 1
    %p76 = scmp.ne.s32.totalorder %s71, %s73
    %p77 = scmp.eq.s32.totalorder %s11, 0
    %p78 = por %p76, %p77
    %p79 = scmp.ne.s32.totalorder %s71, %s73
    %p80 = scmp.eq.s32.totalorder %s16, 1
    %p81 = por %p79, %p80
    %p82 = scmp.ne.s32.totalorder %s73, %s74
    %p83 = scmp.eq.s32.totalorder %s16, 0
    %p84 = por %p82, %p83
    %p85 = scmp.ne.s32.totalorder %s73, %s74
    %p86 = scmp.eq.s32.totalorder %s17, 1
    %p87 = por %p85, %p86
    %p89 = scmp.ne.s32.totalorder %s74, %s88
    %p90 = scmp.eq.s32.totalorder %s17, 0
    %p91 = por %p89, %p90
    %s93 = sadd.s32 %s92, 1
    %p96 = scmp.eq.s32.totalorder %s11, 1
    %p97 = scmp.ne.s32.totalorder %s92, %s94
    %p98 = scmp.eq.s32.totalorder %s11, 0
    %p99 = por %p97, %p98
    %p100 = scmp.ne.s32.totalorder %s92, %s94
    %p101 = scmp.eq.s32.totalorder %s16, 1
    %p102 = por %p100, %p101
    %p103 = scmp.ne.s32.totalorder %s94, %s95
    %p104 = scmp.eq.s32.totalorder %s16, 0
    %p105 = por %p103, %p104
    %p106 = scmp.ne.s32.totalorder %s94, %s95
    %p107 = scmp.eq.s32.totalorder %s17, 1
    %p108 = por %p106, %p107
    %p110 = scmp.ne.s32.totalorder %s95, %s109
    %p111 = scmp.eq.s32.totalorder %s17, 0
    %p112 = por %p110, %p111
    %s114 = sadd.s32 %s113, 1
    %p117 = scmp.eq.s32.totalorder %s11, 1
    %p118 = scmp.ne.s32.totalorder %s113, %s115
    %p119 = scmp.eq.s32.totalorder %s11, 0
    %p120 = por %p118, %p119
    %p121 = scmp.ne.s32.totalorder %s113, %s115
    %p122 = scmp.eq.s32.totalorder %s16, 1
    %p123 = por %p121, %p122
    %p124 = scmp.ne.s32.totalorder %s115, %s116
    %p125 = scmp.eq.s32.totalorder %s16, 0
    %p126 = por %p124, %p125
    %p127 = scmp.ne.s32.totalorder %s115, %s116
    %p128 = scmp.eq.s32.totalorder %s17, 1
    %p129 = por %p127, %p128
    %p131 = scmp.ne.s32.totalorder %s116, %s130
    %p132 = scmp.eq.s32.totalorder %s17, 0
    %p133 = por %p131, %p132
    %s134 = ssub.s32 %s11, %s18
    %p135 = scmp.eq.s32.totalorder %s134, 0
    %s137 = sadd.s32 %s136, 1
    %s138 = scalar_select %p135, %s136, %s137
    %p141 = pneg %p135
    %p142 = scmp.eq.s32.totalorder %s11, 1
    %p143 = por %p141, %p142
    %p144 = scmp.ne.s32.totalorder %s136, %s139
    %p145 = scmp.eq.s32.totalorder %s11, 0
    %p146 = por %p144, %p145
    %p147 = scmp.ne.s32.totalorder %s136, %s139
    %p148 = scmp.eq.s32.totalorder %s16, 1
    %p149 = por %p147, %p148
    %p150 = scmp.ne.s32.totalorder %s139, %s140
    %p151 = scmp.eq.s32.totalorder %s16, 0
    %p152 = por %p150, %p151
    %p153 = scmp.ne.s32.totalorder %s139, %s140
    %p154 = scmp.eq.s32.totalorder %s17, 1
    %p155 = por %p153, %p154
    %p157 = scmp.ne.s32.totalorder %s140, %s156
    %p158 = scmp.eq.s32.totalorder %s17, 0
    %p159 = por %p157, %p158
    %p160 = scmp.le.s32.totalorder 1, %s11
    %p161 = scmp.lt.s32.totalorder %s11, 3
    %p162 = pnand %p160, %p161
    %p163 = pneg %p162
    // Predicated region
    $region9: #{tpu_custom_call.1} parent=5 // pred_check
      _
    $region10: #{tpu_custom_call.1} parent=5 // pred_check_branch
      %165 = sbr.rel (%p162) target = $region12
    $region11: #{tpu_custom_call.1} parent=5 // pred_region
      %s166 = ssub.s32 %s11, 1
      // Predicated region
      $region13: #{tpu_custom_call.1} parent=11 // pred_check
        %p167 = pneg %p84
      $region14: #{tpu_custom_call.1} parent=11 // pred_check_branch
        %169 = sbr.rel (%p167) target = $region16
      $region15: #{tpu_custom_call.1} parent=11 // pred_region
        _
      $region16: #{tpu_custom_call.1} parent=11 // pred_fallthru
        _
      // Predicated region
      $region17: #{tpu_custom_call.1} parent=11 // pred_check
        %p170 = pneg %p105
      $region18: #{tpu_custom_call.1} parent=11 // pred_check_branch
        %172 = sbr.rel (%p170) target = $region20
      $region19: #{tpu_custom_call.1} parent=11 // pred_region
        _
      $region20: #{tpu_custom_call.1} parent=11 // pred_fallthru
        _
      // Predicated region
      $region21: #{tpu_custom_call.1} parent=11 // pred_check
        %p173 = pneg %p126
      $region22: #{tpu_custom_call.1} parent=11 // pred_check_branch
        %175 = sbr.rel (%p173) target = $region24
      $region23: #{tpu_custom_call.1} parent=11 // pred_region
        _
      $region24: #{tpu_custom_call.1} parent=11 // pred_fallthru
        _
    $region12: #{tpu_custom_call.1} parent=5 // pred_fallthru
      _
    %p176 = scmp.lt.s32.totalorder %s11, 2
    // Predicated region
    $region25: #{tpu_custom_call.1} parent=5 // pred_check
      %p177 = pneg %p176
    $region26: #{tpu_custom_call.1} parent=5 // pred_check_branch
      %179 = sbr.rel (%p177) target = $region28
    $region27: #{tpu_custom_call.1} parent=5 // pred_region
      // Predicated region
      $region29: #{tpu_custom_call.1} parent=27 // pred_check
        %p180 = pneg %p31
      $region30: #{tpu_custom_call.1} parent=27 // pred_check_branch
        %182 = sbr.rel (%p180) target = $region32
      $region31: #{tpu_custom_call.1} parent=27 // pred_region
        %s183 = smul.u32 4, %s11
        %p184 = scmp.lt.s32.totalorder %s183, 7
        %s185 = scalar_select %p184, %s183, 7
        %s186 = smul.addr %s185, 8
        %s187 = scalar_lea.vmem %s0, %s186
        %s188 = smul.u32 4, %s11
      $region32: #{tpu_custom_call.1} parent=27 // pred_fallthru
        _
      // Predicated region
      $region33: #{tpu_custom_call.1} parent=27 // pred_check
        %p189 = pneg %p57
      $region34: #{tpu_custom_call.1} parent=27 // pred_check_branch
        %191 = sbr.rel (%p189) target = $region36
      $region35: #{tpu_custom_call.1} parent=27 // pred_region
        %s192 = smul.u32 4, %s11
        %p193 = scmp.lt.s32.totalorder %s192, 7
        %s194 = scalar_select %p193, %s192, 7
        %s195 = smul.addr %s194, 8
        %s196 = scalar_lea.vmem %s1, %s195
        %s197 = smul.u32 4, %s11
      $region36: #{tpu_custom_call.1} parent=27 // pred_fallthru
        _
    $region28: #{tpu_custom_call.1} parent=5 // pred_fallthru
      _
    %p198 = scmp.le.s32.totalorder 1, %s11
    %p199 = scmp.lt.s32.totalorder %s11, 3
    %p200 = pnand %p198, %p199
    %p201 = pneg %p200
    // Predicated region
    $region37: #{tpu_custom_call.1} parent=5 // pred_check
      _
    $region38: #{tpu_custom_call.1} parent=5 // pred_check_branch
      %203 = sbr.rel (%p200) target = $region40
    $region39: #{tpu_custom_call.1} parent=5 // pred_region
      %s204 = ssub.s32 %s11, 1
      %s205 = smul.u32 4, %s16
      %p206 = scmp.lt.s32.totalorder %s205, 7
      %s207 = scalar_select %p206, %s205, 7
      %s208 = smul.addr %s207, 8
      %s209 = scalar_lea.vmem %s0, %s208
      %p210 = pneg %p37
      %p211 = pneg %p34
      %s212 = smul.u32 4, %s16
      %p213 = scmp.lt.s32.totalorder %s212, 7
      %s214 = scalar_select %p213, %s212, 7
      %s215 = smul.addr %s214, 8
      %s216 = scalar_lea.vmem %s1, %s215
      %p217 = pneg %p63
      %p218 = pneg %p60
      %p219 = pneg %p84
      %p220 = pneg %p81
      %p221 = pneg %p105
      %p222 = pneg %p102
      %p223 = pneg %p126
      %p224 = pneg %p123
      %p225 = pneg %p152
      %p226 = pneg %p149
      %s227 = smul.u32 4, %s16
      %p228 = scmp.lt.s32.totalorder %s227, 7
      %s229 = scalar_select %p228, %s227, 7
      %s230 = smul.addr %s229, 8
      %s231 = scalar_lea.vmem %s5, %s230
      %s232 = smul.u32 4, %s16
      %p233 = scmp.lt.s32.totalorder %s232, 7
      %s234 = scalar_select %p233, %s232, 7
      %s235 = smul.addr %s234, 8
      %s236 = scalar_lea.vmem %s0, %s235
      %s237 = smul.u32 4, %s16
      %s238 = smul.u32 4, %s16
      %p239 = scmp.lt.s32.totalorder %s238, 7
      %s240 = scalar_select %p239, %s238, 7
      %s241 = smul.addr %s240, 8
      %s242 = scalar_lea.vmem %s1, %s241
      %s243 = smul.u32 4, %s16
      %s244 = smul.u32 4, %s16
      %p245 = scmp.lt.s32.totalorder %s244, 7
      %s246 = scalar_select %p245, %s244, 7
      %s247 = smul.addr %s246, 8
      %s248 = scalar_lea.vmem %s5, %s247
      %s249 = smul.u32 4, %s16
      %v250 = vld [vmem:[%s236] sm:$0xff]
      %v251 = vld [vmem:[%s236 + $0x8] sm:$0xff]
      %v252 = vld [vmem:[%s236 + $0x10] sm:$0xff]
      %v253 = vld [vmem:[%s236 + $0x18] sm:$0xff]
      %v254 = vld [vmem:[%s2] sm:$0xff]
      %vm255 = vcmask 64512
      %v257 = vsel %vm255, %v250, 0
      %v260 = vsel %vm255, %v251, 0
      %v263 = vsel %vm255, %v252, 0
      %v266 = vsel %vm255, %v253, 0
      %268 = vmatprep.subr.mxu0 0.0
      %269 = vmatpush1.msra.mxu0 0.0
      %270 = vmatprep.subr.mxu0 0.0
      %271 = vmatpush1.msra.mxu0 0.0
      %272 = vmatprep.subr.mxu0 0.0
      %273 = vmatpush1.msra.mxu0 0.0
      %274 = vmatprep.subr.mxu0 0.0
      %275 = vmatpush1.msra.mxu0 0.0
      %276 = vmatprep.subr.mxu0 0.0
      %277 = vmatpush1.msra.mxu0 0.0
      %278 = vmatprep.subr.mxu0 0.0
      %279 = vmatpush1.msra.mxu0 0.0
      %280 = vmatprep.subr.mxu0 0.0
      %281 = vmatpush1.msra.mxu0 0.0
      %282 = vmatprep.subr.mxu0 0.0
      %283 = vmatpush1.msra.mxu0 0.0
      %284 = vmatprep.subr.mxu0 0.0
      %285 = vmatpush1.msra.mxu0 0.0
      %286 = vmatprep.subr.mxu0 0.0
      %287 = vmatpush1.msra.mxu0 0.0
      %288 = vmatprep.subr.mxu0 0.0
      %289 = vmatpush1.msra.mxu0 0.0
      %290 = vmatprep.subr.mxu0 0.0
      %291 = vmatpush1.msra.mxu0 0.0
      %292 = vmatprep.subr.mxu0 0.0
      %293 = vmatpush1.msra.mxu0 0.0
      %294 = vmatprep.subr.mxu0 0.0
      %295 = vmatpush1.msra.mxu0 0.0
      %296 = vmatprep.subr.mxu0 0.0
      %297 = vmatpush1.msra.mxu0 0.0
      %298 = vmatprep.subr.mxu0 0.0
      %299 = vmatpush1.msra.mxu0 %v254
      %300 = vmatprep.subr.mxu0 0.0
      %301 = vmatpush2.msra.mxu0 0.0
      %302 = vmatprep.subr.mxu0 0.0
      %303 = vmatpush2.msra.mxu0 0.0
      %304 = vmatprep.subr.mxu0 0.0
      %305 = vmatpush2.msra.mxu0 0.0
      %306 = vmatprep.subr.mxu0 0.0
      %307 = vmatpush2.msra.mxu0 0.0
      %308 = vmatprep.subr.mxu0 0.0
      %309 = vmatpush2.msra.mxu0 0.0
      %310 = vmatprep.subr.mxu0 0.0
      %311 = vmatpush2.msra.mxu0 0.0
      %312 = vmatprep.subr.mxu0 0.0
      %313 = vmatpush2.msra.mxu0 0.0
      %314 = vmatprep.subr.mxu0 0.0
      %315 = vmatpush2.msra.mxu0 0.0
      %316 = vmatprep.subr.mxu0 0.0
      %317 = vmatpush2.msra.mxu0 0.0
      %318 = vmatprep.subr.mxu0 0.0
      %319 = vmatpush2.msra.mxu0 0.0
      %320 = vmatprep.subr.mxu0 0.0
      %321 = vmatpush2.msra.mxu0 0.0
      %322 = vmatprep.subr.mxu0 0.0
      %323 = vmatpush2.msra.mxu0 0.0
      %324 = vmatprep.subr.mxu0 0.0
      %325 = vmatpush2.msra.mxu0 0.0
      %326 = vmatprep.subr.mxu0 0.0
      %327 = vmatpush2.msra.mxu0 0.0
      %328 = vmatprep.subr.mxu0 0.0
      %329 = vmatpush2.msra.mxu0 0.0
      %330 = vmatprep.subr.mxu0 0.0
      %331 = vmatpush2.msra.mxu0 0.0
      %332 = vmatprep.mubr.f32.mxu0 0.0
      %333 = vmatmul.mubr.f32.gmra.mxu0 %v257
      %v334 = vpop.f32.mrf.mxu0
      %v335 = vadd.f32 0.0, %v334
      %v336 = vpop.f32.mrf.mxu0
      %337 = vmatprep.mubr.f32.mxu0 0.0
      %338 = vmatmul.mubr.f32.gmra.mxu0 %v260
      %v339 = vpop.f32.mrf.mxu0
      %v340 = vadd.f32 0.0, %v339
      %v341 = vpop.f32.mrf.mxu0
      %342 = vmatprep.mubr.f32.mxu0 0.0
      %343 = vmatmul.mubr.f32.gmra.mxu0 %v263
      %v344 = vpop.f32.mrf.mxu0
      %v345 = vadd.f32 0.0, %v344
      %v346 = vpop.f32.mrf.mxu0
      %347 = vmatprep.mubr.f32.mxu0 0.0
      %348 = vmatmul.mubr.f32.gmra.mxu0 %v266
      %v349 = vpop.f32.mrf.mxu0
      %v350 = vadd.f32 0.0, %v349
      %v351 = vpop.f32.mrf.mxu0
      %352 = vdwg.mxu0
      %v353 = vld [vmem:[%s3] sm:$0xff]
      %v354 = vld [vmem:[%s3 + $0x8] sm:$0xff]
      %v355 = vld [vmem:[%s3 + $0x10] sm:$0xff]
      %v356 = vld [vmem:[%s3 + $0x18] sm:$0xff]
      %v357 = vld [vmem:[%s242] sm:$0xff]
      %v358 = vld [vmem:[%s242 + $0x8] sm:$0xff]
      %v359 = vld [vmem:[%s242 + $0x10] sm:$0xff]
      %v360 = vld [vmem:[%s242 + $0x18] sm:$0xff]
      %v361 = vld [vmem:[%s4] sm:$0xff]
      %v362 = vld [vmem:[%s4 + $0x8] sm:$0xff]
      %vm363 = vcmask 130048
      %v365 = vsel %vm363, %v357, 0
      %v368 = vsel %vm363, %v358, 0
      %v371 = vsel %vm363, %v359, 0
      %v374 = vsel %vm363, %v360, 0
      %376 = vmatprep.subr.mxu0 0.0
      %377 = vmatpush1.msra.mxu0 0.0
      %378 = vmatprep.subr.mxu0 0.0
      %379 = vmatpush1.msra.mxu0 0.0
      %380 = vmatprep.subr.mxu0 0.0
      %381 = vmatpush1.msra.mxu0 0.0
      %382 = vmatprep.subr.mxu0 0.0
      %383 = vmatpush1.msra.mxu0 0.0
      %384 = vmatprep.subr.mxu0 0.0
      %385 = vmatpush1.msra.mxu0 0.0
      %386 = vmatprep.subr.mxu0 0.0
      %387 = vmatpush1.msra.mxu0 0.0
      %388 = vmatprep.subr.mxu0 0.0
      %389 = vmatpush1.msra.mxu0 0.0
      %390 = vmatprep.subr.mxu0 0.0
      %391 = vmatpush1.msra.mxu0 0.0
      %392 = vmatprep.subr.mxu0 0.0
      %393 = vmatpush1.msra.mxu0 0.0
      %394 = vmatprep.subr.mxu0 0.0
      %395 = vmatpush1.msra.mxu0 0.0
      %396 = vmatprep.subr.mxu0 0.0
      %397 = vmatpush1.msra.mxu0 0.0
      %398 = vmatprep.subr.mxu0 0.0
      %399 = vmatpush1.msra.mxu0 0.0
      %400 = vmatprep.subr.mxu0 0.0
      %401 = vmatpush1.msra.mxu0 0.0
      %402 = vmatprep.subr.mxu0 0.0
      %403 = vmatpush1.msra.mxu0 0.0
      %404 = vmatprep.subr.mxu0 0.0
      %405 = vmatpush1.msra.mxu0 %v362
      %406 = vmatprep.subr.mxu0 0.0
      %407 = vmatpush1.msra.mxu0 %v361
      %408 = vmatprep.subr.mxu0 0.0
      %409 = vmatpush2.msra.mxu0 0.0
      %410 = vmatprep.subr.mxu0 0.0
      %411 = vmatpush2.msra.mxu0 0.0
      %412 = vmatprep.subr.mxu0 0.0
      %413 = vmatpush2.msra.mxu0 0.0
      %414 = vmatprep.subr.mxu0 0.0
      %415 = vmatpush2.msra.mxu0 0.0
      %416 = vmatprep.subr.mxu0 0.0
      %417 = vmatpush2.msra.mxu0 0.0
      %418 = vmatprep.subr.mxu0 0.0
      %419 = vmatpush2.msra.mxu0 0.0
      %420 = vmatprep.subr.mxu0 0.0
      %421 = vmatpush2.msra.mxu0 0.0
      %422 = vmatprep.subr.mxu0 0.0
      %423 = vmatpush2.msra.mxu0 0.0
      %424 = vmatprep.subr.mxu0 0.0
      %425 = vmatpush2.msra.mxu0 0.0
      %426 = vmatprep.subr.mxu0 0.0
      %427 = vmatpush2.msra.mxu0 0.0
      %428 = vmatprep.subr.mxu0 0.0
      %429 = vmatpush2.msra.mxu0 0.0
      %430 = vmatprep.subr.mxu0 0.0
      %431 = vmatpush2.msra.mxu0 0.0
      %432 = vmatprep.subr.mxu0 0.0
      %433 = vmatpush2.msra.mxu0 0.0
      %434 = vmatprep.subr.mxu0 0.0
      %435 = vmatpush2.msra.mxu0 0.0
      %436 = vmatprep.subr.mxu0 0.0
      %437 = vmatpush2.msra.mxu0 0.0
      %438 = vmatprep.subr.mxu0 0.0
      %439 = vmatpush2.msra.mxu0 0.0
      %440 = vmatprep.mubr.f32.mxu0 0.0
      %441 = vmatmul.mubr.f32.gmra.mxu0 %v365
      %v442 = vpop.f32.mrf.mxu0
      %v443 = vadd.f32 0.0, %v442
      %v444 = vpop.f32.mrf.mxu0
      %445 = vmatprep.mubr.f32.mxu0 0.0
      %446 = vmatmul.mubr.f32.gmra.mxu0 %v368
      %v447 = vpop.f32.mrf.mxu0
      %v448 = vadd.f32 0.0, %v447
      %v449 = vpop.f32.mrf.mxu0
      %450 = vmatprep.mubr.f32.mxu0 0.0
      %451 = vmatmul.mubr.f32.gmra.mxu0 %v371
      %v452 = vpop.f32.mrf.mxu0
      %v453 = vadd.f32 0.0, %v452
      %v454 = vpop.f32.mrf.mxu0
      %455 = vmatprep.mubr.f32.mxu0 0.0
      %456 = vmatmul.mubr.f32.gmra.mxu0 %v374
      %v457 = vpop.f32.mrf.mxu0
      %v458 = vadd.f32 0.0, %v457
      %v459 = vpop.f32.mrf.mxu0
      %460 = vdwg.mxu0
      %vm461 = vcmask 261120
      %v463 = vsel %vm461, %v335, 0
      %v466 = vsel %vm461, %v340, 0
      %v469 = vsel %vm461, %v345, 0
      %v472 = vsel %vm461, %v350, 0
      %474 = vmatprep.subr.mxu0 0.0
      %475 = vmatpush1.msra.mxu0 0.0
      %476 = vmatprep.subr.mxu0 0.0
      %477 = vmatpush1.msra.mxu0 0.0
      %478 = vmatprep.subr.mxu0 0.0
      %479 = vmatpush1.msra.mxu0 0.0
      %480 = vmatprep.subr.mxu0 0.0
      %481 = vmatpush1.msra.mxu0 0.0
      %482 = vmatprep.subr.mxu0 0.0
      %483 = vmatpush1.msra.mxu0 0.0
      %484 = vmatprep.subr.mxu0 0.0
      %485 = vmatpush1.msra.mxu0 0.0
      %486 = vmatprep.subr.mxu0 0.0
      %487 = vmatpush1.msra.mxu0 0.0
      %488 = vmatprep.subr.mxu0 0.0
      %489 = vmatpush1.msra.mxu0 0.0
      %490 = vmatprep.subr.mxu0 0.0
      %491 = vmatpush1.msra.mxu0 0.0
      %492 = vmatprep.subr.mxu0 0.0
      %493 = vmatpush1.msra.mxu0 0.0
      %494 = vmatprep.subr.mxu0 0.0
      %495 = vmatpush1.msra.mxu0 0.0
      %496 = vmatprep.subr.mxu0 0.0
      %497 = vmatpush1.msra.mxu0 0.0
      %498 = vmatprep.subr.mxu0 0.0
      %499 = vmatpush1.msra.mxu0 %v356
      %500 = vmatprep.subr.mxu0 0.0
      %501 = vmatpush1.msra.mxu0 %v355
      %502 = vmatprep.subr.mxu0 0.0
      %503 = vmatpush1.msra.mxu0 %v354
      %504 = vmatprep.subr.mxu0 0.0
      %505 = vmatpush1.msra.mxu0 %v353
      %506 = vmatprep.subr.mxu0 0.0
      %507 = vmatpush2.msra.mxu0 0.0
      %508 = vmatprep.subr.mxu0 0.0
      %509 = vmatpush2.msra.mxu0 0.0
      %510 = vmatprep.subr.mxu0 0.0
      %511 = vmatpush2.msra.mxu0 0.0
      %512 = vmatprep.subr.mxu0 0.0
      %513 = vmatpush2.msra.mxu0 0.0
      %514 = vmatprep.subr.mxu0 0.0
      %515 = vmatpush2.msra.mxu0 0.0
      %516 = vmatprep.subr.mxu0 0.0
      %517 = vmatpush2.msra.mxu0 0.0
      %518 = vmatprep.subr.mxu0 0.0
      %519 = vmatpush2.msra.mxu0 0.0
      %520 = vmatprep.subr.mxu0 0.0
      %521 = vmatpush2.msra.mxu0 0.0
      %522 = vmatprep.subr.mxu0 0.0
      %523 = vmatpush2.msra.mxu0 0.0
      %524 = vmatprep.subr.mxu0 0.0
      %525 = vmatpush2.msra.mxu0 0.0
      %526 = vmatprep.subr.mxu0 0.0
      %527 = vmatpush2.msra.mxu0 0.0
      %528 = vmatprep.subr.mxu0 0.0
      %529 = vmatpush2.msra.mxu0 0.0
      %530 = vmatprep.subr.mxu0 0.0
      %531 = vmatpush2.msra.mxu0 0.0
      %532 = vmatprep.subr.mxu0 0.0
      %533 = vmatpush2.msra.mxu0 0.0
      %534 = vmatprep.subr.mxu0 0.0
      %535 = vmatpush2.msra.mxu0 0.0
      %536 = vmatprep.subr.mxu0 0.0
      %537 = vmatpush2.msra.mxu0 0.0
      %538 = vmatprep.mubr.f32.mxu0 0.0
      %539 = vmatmul.mubr.f32.gmra.mxu0 %v463
      %v540 = vpop.f32.mrf.mxu0
      %v541 = vadd.f32 %v443, %v540
      %v542 = vpop.f32.mrf.mxu0
      %543 = vmatprep.mubr.f32.mxu0 0.0
      %544 = vmatmul.mubr.f32.gmra.mxu0 %v466
      %v545 = vpop.f32.mrf.mxu0
      %v546 = vadd.f32 %v448, %v545
      %v547 = vpop.f32.mrf.mxu0
      %548 = vmatprep.mubr.f32.mxu0 0.0
      %549 = vmatmul.mubr.f32.gmra.mxu0 %v469
      %v550 = vpop.f32.mrf.mxu0
      %v551 = vadd.f32 %v453, %v550
      %v552 = vpop.f32.mrf.mxu0
      %553 = vmatprep.mubr.f32.mxu0 0.0
      %554 = vmatmul.mubr.f32.gmra.mxu0 %v472
      %v555 = vpop.f32.mrf.mxu0
      %v556 = vadd.f32 %v458, %v555
      %v557 = vpop.f32.mrf.mxu0
      %558 = vdwg.mxu0
      %vm559 = vcmask 31744
      %560 = vst.msk [vmem:[%s248] sm:$0xff] %vm559, %v541
      %561 = vst.msk [vmem:[%s248 + $0x8] sm:$0xff] %vm559, %v546
      %562 = vst.msk [vmem:[%s248 + $0x10] sm:$0xff] %vm559, %v551
      %563 = vst.msk [vmem:[%s248 + $0x18] sm:$0xff] %vm559, %v556
      %s564 = smul.u32 4, %s16
      %p565 = scmp.lt.s32.totalorder %s564, 7
      %s566 = scalar_select %p565, %s564, 7
      %s567 = smul.addr %s566, 8
      %s568 = scalar_lea.vmem %s5, %s567
      // Predicated region
      $region41: #{tpu_custom_call.1} parent=39 // pred_check
        %p569 = pneg %p149
      $region42: #{tpu_custom_call.1} parent=39 // pred_check_branch
        %571 = sbr.rel (%p569) target = $region44
      $region43: #{tpu_custom_call.1} parent=39 // pred_region
        %s572 = smul.u32 4, %s16
      $region44: #{tpu_custom_call.1} parent=39 // pred_fallthru
        _
    $region40: #{tpu_custom_call.1} parent=5 // pred_fallthru
      _
    %p573 = scmp.le.s32.totalorder 2, %s11
    // Predicated region
    $region45: #{tpu_custom_call.1} parent=5 // pred_check
      %p574 = pneg %p573
    $region46: #{tpu_custom_call.1} parent=5 // pred_check_branch
      %576 = sbr.rel (%p574) target = $region48
    $region47: #{tpu_custom_call.1} parent=5 // pred_region
      %s577 = ssub.s32 %s11, 2
      // Predicated region
      $region49: #{tpu_custom_call.1} parent=47 // pred_check
        %p578 = pneg %p155
      $region50: #{tpu_custom_call.1} parent=47 // pred_check_branch
        %580 = sbr.rel (%p578) target = $region52
      $region51: #{tpu_custom_call.1} parent=47 // pred_region
        %s581 = smul.u32 4, %s17
        %p582 = scmp.lt.s32.totalorder %s581, 7
        %s583 = scalar_select %p582, %s581, 7
        %s584 = smul.addr %s583, 8
        %s585 = scalar_lea.vmem %s5, %s584
      $region52: #{tpu_custom_call.1} parent=47 // pred_fallthru
        _
    $region48: #{tpu_custom_call.1} parent=5 // pred_fallthru
      _
  $region6: #{tpu_custom_call.1} parent=0 // loop_footer
    %s15 = sadd.s32 1, %s11
  $region7: #{tpu_custom_call.1} parent=0 // loop_footer_branch
    %10 = sbr.rel target = $region3
  $region8: #{tpu_custom_call.1} parent=0 // loop_exit
    _

</llo_original>
